<compile_context>
chip_gen: v5e
topology: v5e:2x2
jax: 0.10.0
libtpu: 0.0.40
codegen_flags: <defaults>
</compile_context>

<pallas_src>
import jax
import jax.numpy as jnp
from jax import lax
from jax.experimental import pallas as pl
from jax.experimental.pallas import tpu as pltpu


def _attention_kernel(xq_ref, xkv_ref, wq_ref, wkv_ref, wproj_ref, bproj_ref,
                      o_ref, ctx_ref, *, num_heads, head_dim):
    # xq_ref:    (1, TQ, C)  query rows of the current tile
    # xkv_ref:   (1, N,  C)  full sequence (for K/V projection)
    # wq_ref:    (C, C)      Q weight (transposed to (in, out)), scale pre-folded
    # wkv_ref:   (C, 2C)     K/V weight (transposed), columns [0:C)=K, [C:2C)=V
    # wproj_ref: (C, C)      output projection weight (transposed)
    # bproj_ref: (1, C)      output projection bias
    # o_ref:     (1, TQ, C)
    # ctx_ref:   (TQ, C)     f32 VMEM scratch holding the concatenated head outputs
    C = num_heads * head_dim
    D = head_dim

    xq = xq_ref[0]                                       # (TQ, C), storage dtype
    xkv = xkv_ref[0]                                     # (N,  C), storage dtype

    # Projections on the MXU with f32 accumulation (scale already folded into wq).
    q_all = jnp.dot(xq, wq_ref[...], preferred_element_type=jnp.float32)     # (TQ, C)
    kv_all = jnp.dot(xkv, wkv_ref[...], preferred_element_type=jnp.float32)  # (N, 2C)

    for h in range(num_heads):
        q = q_all[:, h * D:(h + 1) * D]                  # (TQ, D)
        k = kv_all[:, h * D:(h + 1) * D]                 # (N, D)
        v = kv_all[:, C + h * D:C + (h + 1) * D]         # (N, D)

        # Scores: contract last dims of q and k (no explicit k.T / XLU transpose).
        s = lax.dot_general(q, k, (((1,), (1,)), ((), ())),
                            preferred_element_type=jnp.float32)              # (TQ, N)
        m = jnp.max(s, axis=-1, keepdims=True)
        p = jnp.exp(s - m)                                                   # un-normalized
        l = jnp.sum(p, axis=-1, keepdims=True)                               # (TQ, 1)

        o_h = jnp.dot(p, v, preferred_element_type=jnp.float32)              # (TQ, D)
        # Deferred softmax normalization: scale the (TQ, D) output, not the (TQ, N) probs.
        ctx_ref[:, h * D:(h + 1) * D] = o_h * pl.reciprocal(l, approx=False)

    # Output projection + bias. attn_drop / proj_drop are identity (p = 0.0).
    ctx = ctx_ref[...].astype(wproj_ref.dtype)
    out = jnp.dot(ctx, wproj_ref[...], preferred_element_type=jnp.float32)
    out = out + bproj_ref[...].astype(jnp.float32)
    o_ref[0] = out.astype(o_ref.dtype)


def _pick_query_tile(n):
    # Tile the query axis when it divides cleanly; otherwise process the full sequence
    # per grid step (typical ViT N=197 falls back to a single tile).
    for tq in (256, 128):
        if n % tq == 0:
            return tq
    return n


def attention_forward(x, wqkv_t, wproj_t, bproj, *, num_heads):
    """x: (B, N, C); wqkv_t: (C, 3C) = qkv.weight.T; wproj_t: (C, C) = proj.weight.T; bproj: (C,)."""
    B, N, C = x.shape
    head_dim = C // num_heads
    scale = head_dim ** (-0.5)

    # Split the qkv weight and fold the attention scale into the Q columns (one-time,
    # wrapper-side) so the kernel does no per-step score scaling.
    wq_t = (wqkv_t[:, :C] * jnp.asarray(scale, wqkv_t.dtype)).astype(wqkv_t.dtype)
    wkv_t = wqkv_t[:, C:]
    bproj2d = bproj.reshape(1, C)

    TQ = _pick_query_tile(N)
    num_q_tiles = N // TQ

    kernel = lambda *refs: _attention_kernel(
        *refs, num_heads=num_heads, head_dim=head_dim)

    return pl.pallas_call(
        kernel,
        out_shape=jax.ShapeDtypeStruct((B, N, C), x.dtype),
        grid_spec=pltpu.PrefetchScalarGridSpec(
            num_scalar_prefetch=0,
            grid=(B, num_q_tiles),
            in_specs=[
                pl.BlockSpec((1, TQ, C), lambda b, qi: (b, qi, 0)),   # query rows
                pl.BlockSpec((1, N, C), lambda b, qi: (b, 0, 0)),     # full seq for K/V
                pl.BlockSpec((C, C), lambda b, qi: (0, 0)),           # Wq (scale folded)
                pl.BlockSpec((C, 2 * C), lambda b, qi: (0, 0)),       # Wkv
                pl.BlockSpec((C, C), lambda b, qi: (0, 0)),           # Wproj
                pl.BlockSpec((1, C), lambda b, qi: (0, 0)),           # proj bias
            ],
            out_specs=pl.BlockSpec((1, TQ, C), lambda b, qi: (b, qi, 0)),
            scratch_shapes=[pltpu.VMEM((TQ, C), jnp.float32)],
        ),
        compiler_params=pltpu.CompilerParams(
            dimension_semantics=("parallel", "parallel"),
            vmem_limit_bytes=48 * 1024 * 1024,
        ),
    )(x, x, wq_t, wkv_t, wproj_t, bproj2d)


def attention_reference(x, wqkv_t, wproj_t, bproj, *, num_heads):
    """Plain-JAX reference matching the PyTorch forward exactly (unfused, unscaled weights)."""
    B, N, C = x.shape
    D = C // num_heads
    scale = D ** (-0.5)
    qkv = jnp.einsum('bnc,cd->bnd', x, wqkv_t)                       # (B, N, 3C)
    qkv = qkv.reshape(B, N, 3, num_heads, D).transpose(2, 0, 3, 1, 4)
    q, k, v = qkv[0], qkv[1], qkv[2]                                 # (B, H, N, D)
    attn = jnp.einsum('bhnd,bhmd->bhnm', q, k) * scale
    attn = jax.nn.softmax(attn, axis=-1)
    out = jnp.einsum('bhnm,bhmd->bhnd', attn, v)                     # (B, H, N, D)
    out = out.transpose(0, 2, 1, 3).reshape(B, N, C)
    return jnp.einsum('bnc,cd->bnd', out, wproj_t) + bproj


if __name__ == "__main__":
    # Small shapes consistent with the module: B=2, N=8 tokens, C=32, 4 heads (head_dim=8).
    B, N, C = 2, 8, 32
    num_heads = 4

    key = jax.random.PRNGKey(0)
    kx, kqkv, kproj_w, kproj_b = jax.random.split(key, 4)

    x = jax.random.normal(kx, (B, N, C), dtype=jnp.float32)

    # nn.Linear(dim, 3*dim, bias=False): weight (3C, C). We pass W.T = (C, 3C).
    wqkv = jax.random.normal(kqkv, (3 * C, C), dtype=jnp.float32) * 0.02
    # nn.Linear(dim, dim): weight (C, C), bias (C,). We pass W.T.
    wproj = jax.random.normal(kproj_w, (C, C), dtype=jnp.float32) * 0.02
    bproj = jax.random.normal(kproj_b, (C,), dtype=jnp.float32) * 0.02

    wqkv_t = wqkv.T
    wproj_t = wproj.T

    out = attention_forward(x, wqkv_t, wproj_t, bproj, num_heads=num_heads)
    out = jax.block_until_ready(out)

    ref = attention_reference(x, wqkv_t, wproj_t, bproj, num_heads=num_heads)
    assert out.shape == (B, N, C)
    assert jnp.allclose(out, ref, atol=1e-5, rtol=1e-5), "mismatch vs reference"

    print("KERNEL_OK")
</pallas_src>

<mosaic_0001>
module attributes {stable_mosaic.version = 11 : i64} {
  func.func @_lambda_(%arg0: i32, %arg1: i32, %arg2: memref<1x8x32xf32, #tpu.memory_space<vmem>>, %arg3: memref<1x8x32xf32, #tpu.memory_space<vmem>>, %arg4: memref<32x32xf32, #tpu.memory_space<vmem>>, %arg5: memref<32x64xf32, #tpu.memory_space<vmem>>, %arg6: memref<32x32xf32, #tpu.memory_space<vmem>>, %arg7: memref<1x32xf32, #tpu.memory_space<vmem>>, %arg8: memref<1x8x32xf32, #tpu.memory_space<vmem>>, %arg9: memref<8x32xf32, #tpu.memory_space<vmem>>) attributes {dimension_semantics = [#tpu.dimension_semantics<parallel>, #tpu.dimension_semantics<parallel>], iteration_bounds = array<i64: 2, 1>, scalar_prefetch = 0 : i64, scratch_operands = 1 : i64, tpu.core_type = #tpu.core_type<tc>, window_params = [{transform_indices = @transform_0, window_bounds = array<i64: 1, 8, 32>}, {transform_indices = @transform_1, window_bounds = array<i64: 1, 8, 32>}, {pipeline_mode = #tpu.pipeline_mode<synchronous>, transform_indices = @transform_2, window_bounds = array<i64: 32, 32>}, {pipeline_mode = #tpu.pipeline_mode<synchronous>, transform_indices = @transform_3, window_bounds = array<i64: 32, 64>}, {pipeline_mode = #tpu.pipeline_mode<synchronous>, transform_indices = @transform_4, window_bounds = array<i64: 32, 32>}, {pipeline_mode = #tpu.pipeline_mode<synchronous>, transform_indices = @transform_5, window_bounds = array<i64: 1, 32>}, {transform_indices = @transform_6, window_bounds = array<i64: 1, 8, 32>}]} {
    %c0 = arith.constant 0 : index
    %c0_0 = arith.constant 0 : index
    %c0_1 = arith.constant 0 : index
    %0 = vector.load %arg2[%c0, %c0_0, %c0_1] : memref<1x8x32xf32, #tpu.memory_space<vmem>>, vector<1x8x32xf32>
    %1 = vector.shape_cast %0 : vector<1x8x32xf32> to vector<8x32xf32>
    %c0_2 = arith.constant 0 : index
    %c0_3 = arith.constant 0 : index
    %c0_4 = arith.constant 0 : index
    %2 = vector.load %arg3[%c0_2, %c0_3, %c0_4] : memref<1x8x32xf32, #tpu.memory_space<vmem>>, vector<1x8x32xf32>
    %3 = vector.shape_cast %2 : vector<1x8x32xf32> to vector<8x32xf32>
    %c0_5 = arith.constant 0 : index
    %c0_6 = arith.constant 0 : index
    %4 = vector.load %arg4[%c0_5, %c0_6] : memref<32x32xf32, #tpu.memory_space<vmem>>, vector<32x32xf32>
    %cst = arith.constant dense<0.000000e+00> : vector<8x32xf32>
    %5 = tpu.matmul %1, %4, %cst {dimension_numbers = #tpu.dot_dimension_numbers<[1], [0], [0], [1], [0, 0, 1, 1], [], []>} : vector<8x32xf32>, vector<32x32xf32>, vector<8x32xf32> -> vector<8x32xf32>
    %c0_7 = arith.constant 0 : index
    %c0_8 = arith.constant 0 : index
    %6 = vector.load %arg5[%c0_7, %c0_8] : memref<32x64xf32, #tpu.memory_space<vmem>>, vector<32x64xf32>
    %cst_9 = arith.constant dense<0.000000e+00> : vector<8x64xf32>
    %7 = tpu.matmul %3, %6, %cst_9 {dimension_numbers = #tpu.dot_dimension_numbers<[1], [0], [0], [1], [0, 0, 1, 1], [], []>} : vector<8x32xf32>, vector<32x64xf32>, vector<8x64xf32> -> vector<8x64xf32>
    %8 = vector.extract_strided_slice %5 {offsets = [0, 0], sizes = [8, 8], strides = [1, 1]} : vector<8x32xf32> to vector<8x8xf32>
    %9 = vector.extract_strided_slice %7 {offsets = [0, 0], sizes = [8, 8], strides = [1, 1]} : vector<8x64xf32> to vector<8x8xf32>
    %10 = vector.extract_strided_slice %7 {offsets = [0, 32], sizes = [8, 8], strides = [1, 1]} : vector<8x64xf32> to vector<8x8xf32>
    %cst_10 = arith.constant dense<0.000000e+00> : vector<8x8xf32>
    %11 = tpu.matmul %8, %9, %cst_10 {dimension_numbers = #tpu.dot_dimension_numbers<[1], [1], [0], [0], [0, 0, 1, 0], [], []>} : vector<8x8xf32>, vector<8x8xf32>, vector<8x8xf32> -> vector<8x8xf32>
    %cst_11 = arith.constant dense<0xFF800000> : vector<8xf32>
    %12 = vector.multi_reduction <maximumf>, %11, %cst_11 [1] : vector<8x8xf32> to vector<8xf32>
    %13 = vector.shape_cast %12 : vector<8xf32> to vector<8x1xf32>
    %14 = vector.broadcast %13 : vector<8x1xf32> to vector<8x8xf32>
    %15 = arith.subf %11, %14 : vector<8x8xf32>
    %16 = math.exp %15 : vector<8x8xf32>
    %cst_12 = arith.constant dense<0.000000e+00> : vector<8xf32>
    %17 = vector.multi_reduction <add>, %16, %cst_12 [1] : vector<8x8xf32> to vector<8xf32>
    %18 = vector.shape_cast %17 : vector<8xf32> to vector<8x1xf32>
    %cst_13 = arith.constant dense<0.000000e+00> : vector<8x8xf32>
    %19 = tpu.matmul %16, %10, %cst_13 {dimension_numbers = #tpu.dot_dimension_numbers<[1], [0], [0], [1], [0, 0, 1, 1], [], []>} : vector<8x8xf32>, vector<8x8xf32>, vector<8x8xf32> -> vector<8x8xf32>
    %20 = tpu.reciprocal %18 : vector<8x1xf32> -> vector<8x1xf32>
    %21 = vector.broadcast %20 : vector<8x1xf32> to vector<8x8xf32>
    %22 = arith.mulf %19, %21 : vector<8x8xf32>
    %c0_14 = arith.constant 0 : index
    %c0_15 = arith.constant 0 : index
    %23 = vector.load %arg9[%c0_14, %c0_15] : memref<8x32xf32, #tpu.memory_space<vmem>>, vector<8x8xf32>
    tpu.vector_store %arg9[%c0_14, %c0_15], %22 {strides = array<i32>} : memref<8x32xf32, #tpu.memory_space<vmem>>, vector<8x8xf32>,
    %24 = vector.extract_strided_slice %5 {offsets = [0, 8], sizes = [8, 8], strides = [1, 1]} : vector<8x32xf32> to vector<8x8xf32>
    %25 = vector.extract_strided_slice %7 {offsets = [0, 8], sizes = [8, 8], strides = [1, 1]} : vector<8x64xf32> to vector<8x8xf32>
    %26 = vector.extract_strided_slice %7 {offsets = [0, 40], sizes = [8, 8], strides = [1, 1]} : vector<8x64xf32> to vector<8x8xf32>
    %cst_16 = arith.constant dense<0.000000e+00> : vector<8x8xf32>
    %27 = tpu.matmul %24, %25, %cst_16 {dimension_numbers = #tpu.dot_dimension_numbers<[1], [1], [0], [0], [0, 0, 1, 0], [], []>} : vector<8x8xf32>, vector<8x8xf32>, vector<8x8xf32> -> vector<8x8xf32>
    %cst_17 = arith.constant dense<0xFF800000> : vector<8xf32>
    %28 = vector.multi_reduction <maximumf>, %27, %cst_17 [1] : vector<8x8xf32> to vector<8xf32>
    %29 = vector.shape_cast %28 : vector<8xf32> to vector<8x1xf32>
    %30 = vector.broadcast %29 : vector<8x1xf32> to vector<8x8xf32>
    %31 = arith.subf %27, %30 : vector<8x8xf32>
    %32 = math.exp %31 : vector<8x8xf32>
    %cst_18 = arith.constant dense<0.000000e+00> : vector<8xf32>
    %33 = vector.multi_reduction <add>, %32, %cst_18 [1] : vector<8x8xf32> to vector<8xf32>
    %34 = vector.shape_cast %33 : vector<8xf32> to vector<8x1xf32>
    %cst_19 = arith.constant dense<0.000000e+00> : vector<8x8xf32>
    %35 = tpu.matmul %32, %26, %cst_19 {dimension_numbers = #tpu.dot_dimension_numbers<[1], [0], [0], [1], [0, 0, 1, 1], [], []>} : vector<8x8xf32>, vector<8x8xf32>, vector<8x8xf32> -> vector<8x8xf32>
    %36 = tpu.reciprocal %34 : vector<8x1xf32> -> vector<8x1xf32>
    %37 = vector.broadcast %36 : vector<8x1xf32> to vector<8x8xf32>
    %38 = arith.mulf %35, %37 : vector<8x8xf32>
    %c0_20 = arith.constant 0 : index
    %c8 = arith.constant 8 : index
    %39 = vector.load %arg9[%c0_20, %c8] : memref<8x32xf32, #tpu.memory_space<vmem>>, vector<8x8xf32>
    tpu.vector_store %arg9[%c0_20, %c8], %38 {strides = array<i32>} : memref<8x32xf32, #tpu.memory_space<vmem>>, vector<8x8xf32>,
    %40 = vector.extract_strided_slice %5 {offsets = [0, 16], sizes = [8, 8], strides = [1, 1]} : vector<8x32xf32> to vector<8x8xf32>
    %41 = vector.extract_strided_slice %7 {offsets = [0, 16], sizes = [8, 8], strides = [1, 1]} : vector<8x64xf32> to vector<8x8xf32>
    %42 = vector.extract_strided_slice %7 {offsets = [0, 48], sizes = [8, 8], strides = [1, 1]} : vector<8x64xf32> to vector<8x8xf32>
    %cst_21 = arith.constant dense<0.000000e+00> : vector<8x8xf32>
    %43 = tpu.matmul %40, %41, %cst_21 {dimension_numbers = #tpu.dot_dimension_numbers<[1], [1], [0], [0], [0, 0, 1, 0], [], []>} : vector<8x8xf32>, vector<8x8xf32>, vector<8x8xf32> -> vector<8x8xf32>
    %cst_22 = arith.constant dense<0xFF800000> : vector<8xf32>
    %44 = vector.multi_reduction <maximumf>, %43, %cst_22 [1] : vector<8x8xf32> to vector<8xf32>
    %45 = vector.shape_cast %44 : vector<8xf32> to vector<8x1xf32>
    %46 = vector.broadcast %45 : vector<8x1xf32> to vector<8x8xf32>
    %47 = arith.subf %43, %46 : vector<8x8xf32>
    %48 = math.exp %47 : vector<8x8xf32>
    %cst_23 = arith.constant dense<0.000000e+00> : vector<8xf32>
    %49 = vector.multi_reduction <add>, %48, %cst_23 [1] : vector<8x8xf32> to vector<8xf32>
    %50 = vector.shape_cast %49 : vector<8xf32> to vector<8x1xf32>
    %cst_24 = arith.constant dense<0.000000e+00> : vector<8x8xf32>
    %51 = tpu.matmul %48, %42, %cst_24 {dimension_numbers = #tpu.dot_dimension_numbers<[1], [0], [0], [1], [0, 0, 1, 1], [], []>} : vector<8x8xf32>, vector<8x8xf32>, vector<8x8xf32> -> vector<8x8xf32>
    %52 = tpu.reciprocal %50 : vector<8x1xf32> -> vector<8x1xf32>
    %53 = vector.broadcast %52 : vector<8x1xf32> to vector<8x8xf32>
    %54 = arith.mulf %51, %53 : vector<8x8xf32>
    %c0_25 = arith.constant 0 : index
    %c16 = arith.constant 16 : index
    %55 = vector.load %arg9[%c0_25, %c16] : memref<8x32xf32, #tpu.memory_space<vmem>>, vector<8x8xf32>
    tpu.vector_store %arg9[%c0_25, %c16], %54 {strides = array<i32>} : memref<8x32xf32, #tpu.memory_space<vmem>>, vector<8x8xf32>,
    %56 = vector.extract_strided_slice %5 {offsets = [0, 24], sizes = [8, 8], strides = [1, 1]} : vector<8x32xf32> to vector<8x8xf32>
    %57 = vector.extract_strided_slice %7 {offsets = [0, 24], sizes = [8, 8], strides = [1, 1]} : vector<8x64xf32> to vector<8x8xf32>
    %58 = vector.extract_strided_slice %7 {offsets = [0, 56], sizes = [8, 8], strides = [1, 1]} : vector<8x64xf32> to vector<8x8xf32>
    %cst_26 = arith.constant dense<0.000000e+00> : vector<8x8xf32>
    %59 = tpu.matmul %56, %57, %cst_26 {dimension_numbers = #tpu.dot_dimension_numbers<[1], [1], [0], [0], [0, 0, 1, 0], [], []>} : vector<8x8xf32>, vector<8x8xf32>, vector<8x8xf32> -> vector<8x8xf32>
    %cst_27 = arith.constant dense<0xFF800000> : vector<8xf32>
    %60 = vector.multi_reduction <maximumf>, %59, %cst_27 [1] : vector<8x8xf32> to vector<8xf32>
    %61 = vector.shape_cast %60 : vector<8xf32> to vector<8x1xf32>
    %62 = vector.broadcast %61 : vector<8x1xf32> to vector<8x8xf32>
    %63 = arith.subf %59, %62 : vector<8x8xf32>
    %64 = math.exp %63 : vector<8x8xf32>
    %cst_28 = arith.constant dense<0.000000e+00> : vector<8xf32>
    %65 = vector.multi_reduction <add>, %64, %cst_28 [1] : vector<8x8xf32> to vector<8xf32>
    %66 = vector.shape_cast %65 : vector<8xf32> to vector<8x1xf32>
    %cst_29 = arith.constant dense<0.000000e+00> : vector<8x8xf32>
    %67 = tpu.matmul %64, %58, %cst_29 {dimension_numbers = #tpu.dot_dimension_numbers<[1], [0], [0], [1], [0, 0, 1, 1], [], []>} : vector<8x8xf32>, vector<8x8xf32>, vector<8x8xf32> -> vector<8x8xf32>
    %68 = tpu.reciprocal %66 : vector<8x1xf32> -> vector<8x1xf32>
    %69 = vector.broadcast %68 : vector<8x1xf32> to vector<8x8xf32>
    %70 = arith.mulf %67, %69 : vector<8x8xf32>
    %c0_30 = arith.constant 0 : index
    %c24 = arith.constant 24 : index
    %71 = vector.load %arg9[%c0_30, %c24] : memref<8x32xf32, #tpu.memory_space<vmem>>, vector<8x8xf32>
    tpu.vector_store %arg9[%c0_30, %c24], %70 {strides = array<i32>} : memref<8x32xf32, #tpu.memory_space<vmem>>, vector<8x8xf32>,
    %c0_31 = arith.constant 0 : index
    %c0_32 = arith.constant 0 : index
    %72 = vector.load %arg9[%c0_31, %c0_32] : memref<8x32xf32, #tpu.memory_space<vmem>>, vector<8x32xf32>
    %c0_33 = arith.constant 0 : index
    %c0_34 = arith.constant 0 : index
    %73 = vector.load %arg6[%c0_33, %c0_34] : memref<32x32xf32, #tpu.memory_space<vmem>>, vector<32x32xf32>
    %cst_35 = arith.constant dense<0.000000e+00> : vector<8x32xf32>
    %74 = tpu.matmul %72, %73, %cst_35 {dimension_numbers = #tpu.dot_dimension_numbers<[1], [0], [0], [1], [0, 0, 1, 1], [], []>} : vector<8x32xf32>, vector<32x32xf32>, vector<8x32xf32> -> vector<8x32xf32>
    %c0_36 = arith.constant 0 : index
    %c0_37 = arith.constant 0 : index
    %75 = vector.load %arg7[%c0_36, %c0_37] : memref<1x32xf32, #tpu.memory_space<vmem>>, vector<1x32xf32>
    %76 = vector.broadcast %75 : vector<1x32xf32> to vector<8x32xf32>
    %77 = arith.addf %74, %76 : vector<8x32xf32>
    %c0_38 = arith.constant 0 : index
    %c0_39 = arith.constant 0 : index
    %c0_40 = arith.constant 0 : index
    %78 = vector.load %arg8[%c0_38, %c0_39, %c0_40] : memref<1x8x32xf32, #tpu.memory_space<vmem>>, vector<1x8x32xf32>
    %79 = vector.shape_cast %78 : vector<1x8x32xf32> to vector<8x32xf32>
    %80 = vector.shape_cast %77 : vector<8x32xf32> to vector<1x8x32xf32>
    tpu.vector_store %arg8[%c0_38, %c0_39, %c0_40], %80 {strides = array<i32>} : memref<1x8x32xf32, #tpu.memory_space<vmem>>, vector<1x8x32xf32>,
    return
  }
  func.func @transform_0(%arg0: i32, %arg1: i32) -> (i32, i32, i32) {
    %c0_i32 = arith.constant 0 : i32
    %c0_i32_0 = arith.constant 0 : i32
    return %arg0, %arg1, %c0_i32 : i32, i32, i32
  }
  func.func @transform_1(%arg0: i32, %arg1: i32) -> (i32, i32, i32) {
    %c0_i32 = arith.constant 0 : i32
    %c0_i32_0 = arith.constant 0 : i32
    %c0_i32_1 = arith.constant 0 : i32
    return %arg0, %c0_i32, %c0_i32_0 : i32, i32, i32
  }
  func.func @transform_2(%arg0: i32, %arg1: i32) -> (i32, i32) {
    %c0_i32 = arith.constant 0 : i32
    %c0_i32_0 = arith.constant 0 : i32
    %c0_i32_1 = arith.constant 0 : i32
    return %c0_i32, %c0_i32_0 : i32, i32
  }
  func.func @transform_3(%arg0: i32, %arg1: i32) -> (i32, i32) {
    %c0_i32 = arith.constant 0 : i32
    %c0_i32_0 = arith.constant 0 : i32
    %c0_i32_1 = arith.constant 0 : i32
    return %c0_i32, %c0_i32_0 : i32, i32
  }
  func.func @transform_4(%arg0: i32, %arg1: i32) -> (i32, i32) {
    %c0_i32 = arith.constant 0 : i32
    %c0_i32_0 = arith.constant 0 : i32
    %c0_i32_1 = arith.constant 0 : i32
    return %c0_i32, %c0_i32_0 : i32, i32
  }
  func.func @transform_5(%arg0: i32, %arg1: i32) -> (i32, i32) {
    %c0_i32 = arith.constant 0 : i32
    %c0_i32_0 = arith.constant 0 : i32
    %c0_i32_1 = arith.constant 0 : i32
    return %c0_i32, %c0_i32_0 : i32, i32
  }
  func.func @transform_6(%arg0: i32, %arg1: i32) -> (i32, i32, i32) {
    %c0_i32 = arith.constant 0 : i32
    %c0_i32_0 = arith.constant 0 : i32
    return %arg0, %arg1, %c0_i32 : i32, i32, i32
  }
}

</mosaic_0001>

<llo_original>
// kernel: tpu_custom_call.1
$region0: #{tpu_custom_call.1}
  #allocation0 [shape = 'u32[]', space=smem, size = 0x4, offset = 0x4, fixed_abs, tag = 'smem constant byte address 0x4 - core index']
  #allocation1 [shape = 'u32[72,128]{1,0:T(1,128)}', space=vmem, size = 0x9000, scoped, tag = 'internal scratch']
  #allocation2 [shape = 'f32[8,32]{1,0:T(8,128)}', space=vmem, size = 0x1000, scoped, tag = 'scratch operand']
  %s0 = inlined_call_operand.hbm [shape: f32[2,8,32], index: 0, kind: input, shape index: {}]
  %s1 = inlined_call_operand.hbm [shape: f32[2,8,32], index: 1, kind: input, shape index: {}]
  %s2 = inlined_call_operand.hbm [shape: f32[32,32], index: 2, kind: input, shape index: {}]
  %s3 = inlined_call_operand.hbm [shape: f32[32,64], index: 3, kind: input, shape index: {}]
  %s4 = inlined_call_operand.hbm [shape: f32[32,32], index: 4, kind: input, shape index: {}]
  %s5 = inlined_call_operand.vmem [shape: f32[1,32], index: 5, kind: input, shape index: {}]
  %s6 = inlined_call_operand.hbm [shape: f32[2,8,32], index: 6, kind: output, shape index: {}]
  %s7 = sld [smem:[#allocation0]]
  $region77: #{tpu_custom_call.1} parent=0
    _
  %s9 = ssub.s32 1, %s7
  %s10 = scalar_select 0, %s9, %s7
  $region1: #{tpu_custom_call.1} parent=0
    #allocation3 [shape = 'u8[8192]{0}', space=vmem, size = 0x2000, scoped, tag = 'input window, operand 0']
    #allocation4 [shape = 's32[2]{0}', space=sflag, size = 0x8, scoped, tag = 'scoped memory for tpu_custom_call.1']
    #allocation5 [shape = 's32[2]{0}', space=sflag, size = 0x8, scoped, tag = 'scoped memory for tpu_custom_call.1']
    #allocation6 [shape = 'u8[8192]{0}', space=vmem, size = 0x2000, scoped, tag = 'input window, operand 1']
    #allocation7 [shape = 's32[2]{0}', space=sflag, size = 0x8, scoped, tag = 'scoped memory for tpu_custom_call.1']
    #allocation8 [shape = 'u8[16384]{0}', space=vmem, size = 0x4000, scoped, tag = 'input window, operand 2, single buffered']
    #allocation9 [shape = 'u8[16384]{0}', space=vmem, size = 0x4000, scoped, tag = 'input window, operand 3, single buffered']
    #allocation10 [shape = 's32[1]{0}', space=sflag, size = 0x4, scoped, tag = 'scoped memory for tpu_custom_call.1']
    #allocation11 [shape = 'u8[16384]{0}', space=vmem, size = 0x4000, scoped, tag = 'input window, operand 4, single buffered']
    #allocation12 [shape = 'u8[8192]{0}', space=vmem, size = 0x2000, scoped, tag = 'output window, operand 0']
    %11 = vsyncpa [#allocation4], 0
    %s12 = scalar_lea.sflag [#allocation4], 1
    %13 = vsyncpa %s12, 0
    %14 = vsyncpa [#allocation7], 0
    %s15 = scalar_lea.sflag [#allocation7], 1
    %16 = vsyncpa %s15, 0
    %17 = vsyncpa [#allocation10], 0
    %18 = vsyncpa [#allocation5], 0
    %s19 = scalar_lea.sflag [#allocation5], 1
    %20 = vsyncpa %s19, 0
    loop: start=0, step=1, limit=4
    $region2: #{tpu_custom_call.1} parent=1 // loop_pre_header
      _
    $region3: #{tpu_custom_call.1} parent=1 // loop_header
      %s22 = sphi 0, %s26
      %p23 = scmp.ge.s32.totalorder %s22, 4
      %s29 = sphi 0, %s41
      %s30 = sphi 0, %s37
      %s31 = sphi 0, %s29
      %s32 = sphi 0, %s30
      %s33 = sphi 0, %s31
      %s34 = sphi 0, %s32
      %s46 = sphi 0, %s48
      %s49 = sphi 0, %s46
      %s50 = sphi 0, %s49
      %s66 = sphi 0, %s50
      %s72 = sphi 0, %s74
      %s75 = sphi 0, %s72
      %s76 = sphi 0, %s75
      %s92 = sphi 0, %s76
      %s96 = sphi 0, %s96
      %s98 = sphi 0, %s96
      %s99 = sphi 0, %s98
      %s113 = sphi 0, %s99
      %s117 = sphi 0, %s117
      %s119 = sphi 0, %s117
      %s120 = sphi 0, %s119
      %s134 = sphi 0, %s120
      %s138 = sphi 0, %s138
      %s140 = sphi 0, %s138
      %s141 = sphi 0, %s140
      %s155 = sphi 0, %s141
      %s159 = sphi 0, %s159
      %s161 = sphi 0, %s159
      %s162 = sphi 0, %s161
      %s176 = sphi 0, %s162
      %s184 = sphi 0, %s186
      %s187 = sphi 0, %s184
      %s188 = sphi 0, %s187
      %s204 = sphi 0, %s188
    $region4: #{tpu_custom_call.1} parent=1 // loop_header_branch
      %25 = sbr.rel (%p23) target = $region8
    $region5: #{tpu_custom_call.1} parent=1 // loop_body
      %s27 = ssub.s32 %s22, 1
      %s28 = ssub.s32 %s22, 2
      %s35 = sadd.s32 1, %s30
      %p36 = scmp.ge.s32.totalorder %s35, 1
      %s37 = scalar_select %p36, 0, %s35
      %s38 = sadd.s32 1, %s29
      %s39 = scalar_select %p36, %s38, %s29
      %p40 = scmp.ge.s32.totalorder %s39, 2
      %s41 = scalar_select %p40, 0, %s39
      %s42 = ssub.s32 %s29, %s41
      %s43 = ssub.s32 %s30, %s37
      %s44 = sor.u32 %s42, %s43
      %p45 = scmp.eq.s32.totalorder %s44, 0
      %s47 = sadd.s32 %s46, 1
      %s48 = scalar_select %p45, %s46, %s47
      %p51 = pneg %p45
      %p52 = scmp.eq.s32.totalorder %s22, 1
      %p53 = por %p51, %p52
      %p54 = scmp.ne.s32.totalorder %s46, %s49
      %p55 = scmp.eq.s32.totalorder %s22, 0
      %p56 = por %p54, %p55
      %p57 = scmp.ne.s32.totalorder %s46, %s49
      %p58 = scmp.eq.s32.totalorder %s27, 1
      %p59 = por %p57, %p58
      %p60 = scmp.ne.s32.totalorder %s49, %s50
      %p61 = scmp.eq.s32.totalorder %s27, 0
      %p62 = por %p60, %p61
      %p63 = scmp.ne.s32.totalorder %s49, %s50
      %p64 = scmp.eq.s32.totalorder %s28, 1
      %p65 = por %p63, %p64
      %p67 = scmp.ne.s32.totalorder %s50, %s66
      %p68 = scmp.eq.s32.totalorder %s28, 0
      %p69 = por %p67, %p68
      %s70 = ssub.s32 %s29, %s41
      %p71 = scmp.eq.s32.totalorder %s70, 0
      %s73 = sadd.s32 %s72, 1
      %s74 = scalar_select %p71, %s72, %s73
      %p77 = pneg %p71
      %p78 = scmp.eq.s32.totalorder %s22, 1
      %p79 = por %p77, %p78
      %p80 = scmp.ne.s32.totalorder %s72, %s75
      %p81 = scmp.eq.s32.totalorder %s22, 0
      %p82 = por %p80, %p81
      %p83 = scmp.ne.s32.totalorder %s72, %s75
      %p84 = scmp.eq.s32.totalorder %s27, 1
      %p85 = por %p83, %p84
      %p86 = scmp.ne.s32.totalorder %s75, %s76
      %p87 = scmp.eq.s32.totalorder %s27, 0
      %p88 = por %p86, %p87
      %p89 = scmp.ne.s32.totalorder %s75, %s76
      %p90 = scmp.eq.s32.totalorder %s28, 1
      %p91 = por %p89, %p90
      %p93 = scmp.ne.s32.totalorder %s76, %s92
      %p94 = scmp.eq.s32.totalorder %s28, 0
      %p95 = por %p93, %p94
      %s97 = sadd.s32 %s96, 1
      %p100 = scmp.eq.s32.totalorder %s22, 1
      %p101 = scmp.ne.s32.totalorder %s96, %s98
      %p102 = scmp.eq.s32.totalorder %s22, 0
      %p103 = por %p101, %p102
      %p104 = scmp.ne.s32.totalorder %s96, %s98
      %p105 = scmp.eq.s32.totalorder %s27, 1
      %p106 = por %p104, %p105
      %p107 = scmp.ne.s32.totalorder %s98, %s99
      %p108 = scmp.eq.s32.totalorder %s27, 0
      %p109 = por %p107, %p108
      %p110 = scmp.ne.s32.totalorder %s98, %s99
      %p111 = scmp.eq.s32.totalorder %s28, 1
      %p112 = por %p110, %p111
      %p114 = scmp.ne.s32.totalorder %s99, %s113
      %p115 = scmp.eq.s32.totalorder %s28, 0
      %p116 = por %p114, %p115
      %s118 = sadd.s32 %s117, 1
      %p121 = scmp.eq.s32.totalorder %s22, 1
      %p122 = scmp.ne.s32.totalorder %s117, %s119
      %p123 = scmp.eq.s32.totalorder %s22, 0
      %p124 = por %p122, %p123
      %p125 = scmp.ne.s32.totalorder %s117, %s119
      %p126 = scmp.eq.s32.totalorder %s27, 1
      %p127 = por %p125, %p126
      %p128 = scmp.ne.s32.totalorder %s119, %s120
      %p129 = scmp.eq.s32.totalorder %s27, 0
      %p130 = por %p128, %p129
      %p131 = scmp.ne.s32.totalorder %s119, %s120
      %p132 = scmp.eq.s32.totalorder %s28, 1
      %p133 = por %p131, %p132
      %p135 = scmp.ne.s32.totalorder %s120, %s134
      %p136 = scmp.eq.s32.totalorder %s28, 0
      %p137 = por %p135, %p136
      %s139 = sadd.s32 %s138, 1
      %p142 = scmp.eq.s32.totalorder %s22, 1
      %p143 = scmp.ne.s32.totalorder %s138, %s140
      %p144 = scmp.eq.s32.totalorder %s22, 0
      %p145 = por %p143, %p144
      %p146 = scmp.ne.s32.totalorder %s138, %s140
      %p147 = scmp.eq.s32.totalorder %s27, 1
      %p148 = por %p146, %p147
      %p149 = scmp.ne.s32.totalorder %s140, %s141
      %p150 = scmp.eq.s32.totalorder %s27, 0
      %p151 = por %p149, %p150
      %p152 = scmp.ne.s32.totalorder %s140, %s141
      %p153 = scmp.eq.s32.totalorder %s28, 1
      %p154 = por %p152, %p153
      %p156 = scmp.ne.s32.totalorder %s141, %s155
      %p157 = scmp.eq.s32.totalorder %s28, 0
      %p158 = por %p156, %p157
      %s160 = sadd.s32 %s159, 1
      %p163 = scmp.eq.s32.totalorder %s22, 1
      %p164 = scmp.ne.s32.totalorder %s159, %s161
      %p165 = scmp.eq.s32.totalorder %s22, 0
      %p166 = por %p164, %p165
      %p167 = scmp.ne.s32.totalorder %s159, %s161
      %p168 = scmp.eq.s32.totalorder %s27, 1
      %p169 = por %p167, %p168
      %p170 = scmp.ne.s32.totalorder %s161, %s162
      %p171 = scmp.eq.s32.totalorder %s27, 0
      %p172 = por %p170, %p171
      %p173 = scmp.ne.s32.totalorder %s161, %s162
      %p174 = scmp.eq.s32.totalorder %s28, 1
      %p175 = por %p173, %p174
      %p177 = scmp.ne.s32.totalorder %s162, %s176
      %p178 = scmp.eq.s32.totalorder %s28, 0
      %p179 = por %p177, %p178
      %s180 = ssub.s32 %s29, %s41
      %s181 = ssub.s32 %s30, %s37
      %s182 = sor.u32 %s180, %s181
      %p183 = scmp.eq.s32.totalorder %s182, 0
      %s185 = sadd.s32 %s184, 1
      %s186 = scalar_select %p183, %s184, %s185
      %p189 = pneg %p183
      %p190 = scmp.eq.s32.totalorder %s22, 1
      %p191 = por %p189, %p190
      %p192 = scmp.ne.s32.totalorder %s184, %s187
      %p193 = scmp.eq.s32.totalorder %s22, 0
      %p194 = por %p192, %p193
      %p195 = scmp.ne.s32.totalorder %s184, %s187
      %p196 = scmp.eq.s32.totalorder %s27, 1
      %p197 = por %p195, %p196
      %p198 = scmp.ne.s32.totalorder %s187, %s188
      %p199 = scmp.eq.s32.totalorder %s27, 0
      %p200 = por %p198, %p199
      %p201 = scmp.ne.s32.totalorder %s187, %s188
      %p202 = scmp.eq.s32.totalorder %s28, 1
      %p203 = por %p201, %p202
      %p205 = scmp.ne.s32.totalorder %s188, %s204
      %p206 = scmp.eq.s32.totalorder %s28, 0
      %p207 = por %p205, %p206
      %p208 = scmp.le.s32.totalorder 1, %s22
      %p209 = scmp.lt.s32.totalorder %s22, 3
      %p210 = pnand %p208, %p209
      %p211 = pneg %p210
      // Predicated region
      $region9: #{tpu_custom_call.1} parent=5 // pred_check
        _
      $region10: #{tpu_custom_call.1} parent=5 // pred_check_branch
        %213 = sbr.rel (%p210) target = $region12
      $region11: #{tpu_custom_call.1} parent=5 // pred_region
        %s214 = ssub.s32 %s22, 1
        // Predicated region
        $region13: #{tpu_custom_call.1} parent=11 // pred_check
          %p215 = pneg %p109
        $region14: #{tpu_custom_call.1} parent=11 // pred_check_branch
          %217 = sbr.rel (%p215) target = $region16
        $region15: #{tpu_custom_call.1} parent=11 // pred_region
          %219 = vsyncadd [#allocation7], 0
          %s220 = sshll.u32 %s2, 4
          %s221 = int_to_ptr.hbm [resolvable:$true] %s220
          %s222 = sshll.u32 [#allocation8], 4
          %s223 = int_to_ptr.vmem [resolvable:$true] %s222
          %228 = dma.hbm_to_vmem [thread:$0]  %s221, 512, %s223, [#allocation7], 128, 128, 8
        $region16: #{tpu_custom_call.1} parent=11 // pred_fallthru
          _
        // Predicated region
        $region17: #{tpu_custom_call.1} parent=11 // pred_check
          %p229 = pneg %p130
        $region18: #{tpu_custom_call.1} parent=11 // pred_check_branch
          %231 = sbr.rel (%p229) target = $region20
        $region19: #{tpu_custom_call.1} parent=11 // pred_region
          %233 = vsyncadd [#allocation10], 0
          %s234 = sshll.u32 %s3, 4
          %s235 = int_to_ptr.hbm [resolvable:$true] %s234
          %s236 = sshll.u32 [#allocation9], 4
          %s237 = int_to_ptr.vmem [resolvable:$true] %s236
          %242 = dma.hbm_to_vmem [thread:$0]  %s235, 512, %s237, [#allocation10], 128, 128, 8
        $region20: #{tpu_custom_call.1} parent=11 // pred_fallthru
          _
        // Predicated region
        $region21: #{tpu_custom_call.1} parent=11 // pred_check
          %p243 = pneg %p151
        $region22: #{tpu_custom_call.1} parent=11 // pred_check_branch
          %245 = sbr.rel (%p243) target = $region24
        $region23: #{tpu_custom_call.1} parent=11 // pred_region
          %247 = vsyncadd [#allocation10], 0
          %s248 = sshll.u32 %s4, 4
          %s249 = int_to_ptr.hbm [resolvable:$true] %s248
          %s250 = sshll.u32 [#allocation11], 4
          %s251 = int_to_ptr.vmem [resolvable:$true] %s250
          %256 = dma.hbm_to_vmem [thread:$0]  %s249, 512, %s251, [#allocation10], 128, 128, 8
        $region24: #{tpu_custom_call.1} parent=11 // pred_fallthru
          _
        // Predicated region
        $region25: #{tpu_custom_call.1} parent=11 // pred_check
          %p257 = pneg %p172
        $region26: #{tpu_custom_call.1} parent=11 // pred_check_branch
          %259 = sbr.rel (%p257) target = $region28
        $region27: #{tpu_custom_call.1} parent=11 // pred_region
          _
        $region28: #{tpu_custom_call.1} parent=11 // pred_fallthru
          _
      $region12: #{tpu_custom_call.1} parent=5 // pred_fallthru
        _
      %p260 = scmp.lt.s32.totalorder %s22, 2
      // Predicated region
      $region29: #{tpu_custom_call.1} parent=5 // pred_check
        %p261 = pneg %p260
      $region30: #{tpu_custom_call.1} parent=5 // pred_check_branch
        %263 = sbr.rel (%p261) target = $region32
      $region31: #{tpu_custom_call.1} parent=5 // pred_region
        // Predicated region
        $region33: #{tpu_custom_call.1} parent=31 // pred_check
          %p264 = pneg %p56
        $region34: #{tpu_custom_call.1} parent=31 // pred_check_branch
          %266 = sbr.rel (%p264) target = $region36
        $region35: #{tpu_custom_call.1} parent=31 // pred_region
          %s267 = sand.u32 %s46, 1
          %s268 = scalar_lea.sflag [#allocation4], %s267
          %s269 = sand.u32 %s46, 1
          %s270 = smul.addr %s269, 8
          %s271 = scalar_lea.vmem [#allocation3], %s270
          %273 = vsyncadd %s268, 0
          %s274 = sadd.s32 %s30, %s29
          %s275 = smul.addr %s274, 8
          %s276 = scalar_lea.hbm %s0, %s275
          %s278 = sshll.u32 %s276, 4
          %s279 = int_to_ptr.hbm [resolvable:$true] %s278
          %s280 = sshll.u32 %s271, 4
          %s281 = int_to_ptr.vmem [resolvable:$true] %s280
          %283 = dma.hbm_to_vmem [thread:$0]  %s279, 128, %s281, %s268
        $region36: #{tpu_custom_call.1} parent=31 // pred_fallthru
          _
        // Predicated region
        $region37: #{tpu_custom_call.1} parent=31 // pred_check
          %p284 = pneg %p82
        $region38: #{tpu_custom_call.1} parent=31 // pred_check_branch
          %286 = sbr.rel (%p284) target = $region40
        $region39: #{tpu_custom_call.1} parent=31 // pred_region
          %s287 = sand.u32 %s22, 1
          %s288 = scalar_lea.sflag [#allocation7], %s287
          %s289 = sand.u32 %s72, 1
          %s290 = smul.addr %s289, 8
          %s291 = scalar_lea.vmem [#allocation6], %s290
          %293 = vsyncadd %s288, 0
          %s294 = smul.addr %s29, 8
          %s295 = scalar_lea.hbm %s1, %s294
          %s297 = sshll.u32 %s295, 4
          %s298 = int_to_ptr.hbm [resolvable:$true] %s297
          %s299 = sshll.u32 %s291, 4
          %s300 = int_to_ptr.vmem [resolvable:$true] %s299
          %302 = dma.hbm_to_vmem [thread:$0]  %s298, 128, %s300, %s288
        $region40: #{tpu_custom_call.1} parent=31 // pred_fallthru
          _
      $region32: #{tpu_custom_call.1} parent=5 // pred_fallthru
        _
      %p303 = scmp.le.s32.totalorder 1, %s22
      %p304 = scmp.lt.s32.totalorder %s22, 3
      %p305 = pnand %p303, %p304
      %p306 = pneg %p305
      // Predicated region
      $region41: #{tpu_custom_call.1} parent=5 // pred_check
        _
      $region42: #{tpu_custom_call.1} parent=5 // pred_check_branch
        %308 = sbr.rel (%p305) target = $region44
      $region43: #{tpu_custom_call.1} parent=5 // pred_region
        %s309 = ssub.s32 %s22, 1
        %s310 = sand.u32 %s49, 1
        %s311 = scalar_lea.sflag [#allocation4], %s310
        %s312 = sand.u32 %s49, 1
        %s313 = smul.addr %s312, 8
        %s314 = scalar_lea.vmem [#allocation3], %s313
        // Predicated region
        $region45: #{tpu_custom_call.1} parent=43 // pred_check
          %p315 = pneg %p62
        $region46: #{tpu_custom_call.1} parent=43 // pred_check_branch
          %317 = sbr.rel (%p315) target = $region48
        $region47: #{tpu_custom_call.1} parent=43 // pred_region
          %319 = dma.done %s311, 128
        $region48: #{tpu_custom_call.1} parent=43 // pred_fallthru
          _
        %s320 = sand.u32 %s27, 1
        %s321 = scalar_lea.sflag [#allocation7], %s320
        %s322 = sand.u32 %s75, 1
        %s323 = smul.addr %s322, 8
        %s324 = scalar_lea.vmem [#allocation6], %s323
        // Predicated region
        $region49: #{tpu_custom_call.1} parent=43 // pred_check
          %p325 = pneg %p88
        $region50: #{tpu_custom_call.1} parent=43 // pred_check_branch
          %327 = sbr.rel (%p325) target = $region52
        $region51: #{tpu_custom_call.1} parent=43 // pred_region
          %329 = dma.done %s321, 128
        $region52: #{tpu_custom_call.1} parent=43 // pred_fallthru
          _
        // Predicated region
        $region53: #{tpu_custom_call.1} parent=43 // pred_check
          %p330 = pneg %p109
        $region54: #{tpu_custom_call.1} parent=43 // pred_check_branch
          %332 = sbr.rel (%p330) target = $region56
        $region55: #{tpu_custom_call.1} parent=43 // pred_region
          %334 = dma.done [#allocation7], 512
        $region56: #{tpu_custom_call.1} parent=43 // pred_fallthru
          _
        // Predicated region
        $region57: #{tpu_custom_call.1} parent=43 // pred_check
          %p335 = pneg %p130
        $region58: #{tpu_custom_call.1} parent=43 // pred_check_branch
          %337 = sbr.rel (%p335) target = $region60
        $region59: #{tpu_custom_call.1} parent=43 // pred_region
          %339 = dma.done [#allocation10], 512
        $region60: #{tpu_custom_call.1} parent=43 // pred_fallthru
          _
        // Predicated region
        $region61: #{tpu_custom_call.1} parent=43 // pred_check
          %p340 = pneg %p151
        $region62: #{tpu_custom_call.1} parent=43 // pred_check_branch
          %342 = sbr.rel (%p340) target = $region64
        $region63: #{tpu_custom_call.1} parent=43 // pred_region
          %344 = dma.done [#allocation10], 512
        $region64: #{tpu_custom_call.1} parent=43 // pred_fallthru
          _
        %s345 = sand.u32 %s49, 1
        %s346 = scalar_lea.sflag [#allocation4], %s345
        %s347 = sand.u32 %s49, 1
        %s348 = smul.addr %s347, 8
        %s349 = scalar_lea.vmem [#allocation3], %s348
        %p350 = pneg %p62
        %p351 = pneg %p59
        %s352 = sand.u32 %s27, 1
        %s353 = scalar_lea.sflag [#allocation7], %s352
        %s354 = sand.u32 %s75, 1
        %s355 = smul.addr %s354, 8
        %s356 = scalar_lea.vmem [#allocation6], %s355
        %p357 = pneg %p88
        %p358 = pneg %p85
        %p359 = pneg %p109
        %p360 = pneg %p106
        %p361 = pneg %p130
        %p362 = pneg %p127
        %p363 = pneg %p151
        %p364 = pneg %p148
        %p365 = pneg %p172
        %p366 = pneg %p169
        %p367 = pneg %p200
        %p368 = pneg %p197
        %s369 = sand.u32 %s187, 1
        %s370 = scalar_lea.sflag [#allocation5], %s369
        %s371 = sand.u32 %s187, 1
        %s372 = smul.addr %s371, 8
        %s373 = scalar_lea.vmem [#allocation12], %s372
        %v374 = vld [vmem:[%s314] sm:$0xff]
        %v375 = vld [vmem:[%s324] sm:$0xff]
        %v376 = vld [vmem:[#allocation8] sm:$0xff]
        %v377 = vld [vmem:[#allocation8 + $0x8] sm:$0xff]
        %v378 = vld [vmem:[#allocation8 + $0x10] sm:$0xff]
        %v379 = vld [vmem:[#allocation8 + $0x18] sm:$0xff]
        %vm380 = vcmask 261120
        %v382 = vsel %vm380, %v374, 0
        %384 = vmatpush.msra.mxu0 0.0
        %385 = vmatpush.msra.mxu0 0.0
        %386 = vmatpush.msra.mxu0 0.0
        %387 = vmatpush.msra.mxu0 0.0
        %388 = vmatpush.msra.mxu0 0.0
        %389 = vmatpush.msra.mxu0 0.0
        %390 = vmatpush.msra.mxu0 0.0
        %391 = vmatpush.msra.mxu0 0.0
        %392 = vmatpush.msra.mxu0 0.0
        %393 = vmatpush.msra.mxu0 0.0
        %394 = vmatpush.msra.mxu0 0.0
        %395 = vmatpush.msra.mxu0 0.0
        %396 = vmatpush.msra.mxu0 %v379
        %397 = vmatpush.msra.mxu0 %v378
        %398 = vmatpush.msra.mxu0 %v377
        %399 = vmatpush.msra.mxu0 %v376
        %400 = vmatmul.f32.gmra.mxu0 %v382
        %v401 = vpop.f32.mrf.mxu0
        %v402 = vadd.f32 0.0, %v401
        %403 = vdwg.mxu0
        %v404 = vld [vmem:[#allocation9] sm:$0xff]
        %v405 = vld [vmem:[#allocation9 + $0x8] sm:$0xff]
        %v406 = vld [vmem:[#allocation9 + $0x10] sm:$0xff]
        %v407 = vld [vmem:[#allocation9 + $0x18] sm:$0xff]
        %v409 = vsel %vm380, %v375, 0
        %411 = vmatpush.msra.mxu0 0.0
        %412 = vmatpush.msra.mxu0 0.0
        %413 = vmatpush.msra.mxu0 0.0
        %414 = vmatpush.msra.mxu0 0.0
        %415 = vmatpush.msra.mxu0 0.0
        %416 = vmatpush.msra.mxu0 0.0
        %417 = vmatpush.msra.mxu0 0.0
        %418 = vmatpush.msra.mxu0 0.0
        %419 = vmatpush.msra.mxu0 0.0
        %420 = vmatpush.msra.mxu0 0.0
        %421 = vmatpush.msra.mxu0 0.0
        %422 = vmatpush.msra.mxu0 0.0
        %423 = vmatpush.msra.mxu0 %v407
        %424 = vmatpush.msra.mxu0 %v406
        %425 = vmatpush.msra.mxu0 %v405
        %426 = vmatpush.msra.mxu0 %v404
        %427 = vmatmul.f32.gmra.mxu0 %v409
        %v428 = vpop.f32.mrf.mxu0
        %v429 = vadd.f32 0.0, %v428
        %430 = vdwg.mxu0
        %vm431 = vcmask 64512
        %v433 = vsel %vm431, %v402, 0
        %v436 = vsel %vm431, %v429, 0
        %438 = vmatpush.xpose.msra.mxu0 0.0
        %439 = vmatpush.xpose.msra.mxu0 0.0
        %440 = vmatpush.xpose.msra.mxu0 0.0
        %441 = vmatpush.xpose.msra.mxu0 0.0
        %442 = vmatpush.xpose.msra.mxu0 0.0
        %443 = vmatpush.xpose.msra.mxu0 0.0
        %444 = vmatpush.xpose.msra.mxu0 0.0
        %445 = vmatpush.xpose.msra.mxu0 0.0
        %446 = vmatpush.xpose.msra.mxu0 0.0
        %447 = vmatpush.xpose.msra.mxu0 0.0
        %448 = vmatpush.xpose.msra.mxu0 0.0
        %449 = vmatpush.xpose.msra.mxu0 0.0
        %450 = vmatpush.xpose.msra.mxu0 0.0
        %451 = vmatpush.xpose.msra.mxu0 0.0
        %452 = vmatpush.xpose.msra.mxu0 0.0
        %453 = vmatpush.xpose.msra.mxu0 %v436
        %454 = vmatmul.f32.gmra.mxu0 %v433
        %v455 = vpop.f32.mrf.mxu0
        %v456 = vadd.f32 0.0, %v455
        %457 = vdwg.mxu0
        %v458 = vsel %vm431, %v456, -inf
        %459 = vmax.xlane.f32.xlu0 %v458
        %v460 = vpop.xlane.xlu0 %459
        %v461 = vsub.f32 %v456, %v460
        %v462 = vmul.f32 %v461, 1.442695
        %v463 = vpow.pop %v462
        %v464 = vsel %vm431, %v463, 0.0
        %465 = vadd.xlane.f32.xlu0 %v464
        %v466 = vpop.xlane.xlu0 %465
        %467 = vrot.lane.b32.xlu0 %v429, 96
        %v468 = vpop.permute.xlu0 %467
        %v471 = vsel %vm431, %v463, 0
        %473 = vmatpush.msra.mxu0 0.0
        %474 = vmatpush.msra.mxu0 0.0
        %475 = vmatpush.msra.mxu0 0.0
        %476 = vmatpush.msra.mxu0 0.0
        %477 = vmatpush.msra.mxu0 0.0
        %478 = vmatpush.msra.mxu0 0.0
        %479 = vmatpush.msra.mxu0 0.0
        %480 = vmatpush.msra.mxu0 0.0
        %481 = vmatpush.msra.mxu0 0.0
        %482 = vmatpush.msra.mxu0 0.0
        %483 = vmatpush.msra.mxu0 0.0
        %484 = vmatpush.msra.mxu0 0.0
        %485 = vmatpush.msra.mxu0 0.0
        %486 = vmatpush.msra.mxu0 0.0
        %487 = vmatpush.msra.mxu0 0.0
        %488 = vmatpush.msra.mxu0 %v468
        %489 = vmatmul.f32.gmra.mxu0 %v471
        %v490 = vpop.f32.mrf.mxu0
        %v491 = vadd.f32 0.0, %v490
        %492 = vdwg.mxu0
        %v493 = vrcp.pop %v466
        %v494 = vmul.f32 %v466, %v493
        %v495 = vsub.f32 1.0, %v494
        %v496 = vmul.f32 %v493, %v495
        %v497 = vadd.f32 %v493, %v496
        %vm498 = vweird.f32 %v466
        %vm499 = vweird.f32 %v493
        %vm500 = vmor %vm498, %vm499
        %v501 = vsel %vm500, %v493, %v497
        %v502 = vand.u32 2147483647, %v466
        %vm503 = vcmp.eq.f32.partialorder %v502, 8.507059e+37
        %v504 = vand.u32 %v466, 2147483648
        %v505 = vor.u32 1.1754944e-38, %v504
        %v506 = vsel %vm503, %v505, %v501
        %v507 = vmul.f32 %v491, %v506
        %508 = vst.msk [vmem:[#allocation2] sm:$0xff] %vm431, %v507
        %509 = vrot.lane.b32.xlu0 %v402, 120
        %v510 = vpop.permute.xlu0 %509
        %511 = vrot.lane.b32.xlu0 %v429, 120
        %v512 = vpop.permute.xlu0 %511
        %v513 = vsel %vm431, %v510, 0
        %v515 = vsel %vm431, %v512, 0
        %517 = vmatpush.xpose.msra.mxu0 0.0
        %518 = vmatpush.xpose.msra.mxu0 0.0
        %519 = vmatpush.xpose.msra.mxu0 0.0
        %520 = vmatpush.xpose.msra.mxu0 0.0
        %521 = vmatpush.xpose.msra.mxu0 0.0
        %522 = vmatpush.xpose.msra.mxu0 0.0
        %523 = vmatpush.xpose.msra.mxu0 0.0
        %524 = vmatpush.xpose.msra.mxu0 0.0
        %525 = vmatpush.xpose.msra.mxu0 0.0
        %526 = vmatpush.xpose.msra.mxu0 0.0
        %527 = vmatpush.xpose.msra.mxu0 0.0
        %528 = vmatpush.xpose.msra.mxu0 0.0
        %529 = vmatpush.xpose.msra.mxu0 0.0
        %530 = vmatpush.xpose.msra.mxu0 0.0
        %531 = vmatpush.xpose.msra.mxu0 0.0
        %532 = vmatpush.xpose.msra.mxu0 %v515
        %533 = vmatmul.f32.gmra.mxu0 %v513
        %v534 = vpop.f32.mrf.mxu0
        %v535 = vadd.f32 0.0, %v534
        %536 = vdwg.mxu0
        %v537 = vsel %vm431, %v535, -inf
        %538 = vmax.xlane.f32.xlu0 %v537
        %v539 = vpop.xlane.xlu0 %538
        %v540 = vsub.f32 %v535, %v539
        %v541 = vmul.f32 %v540, 1.442695
        %v542 = vpow.pop %v541
        %v543 = vsel %vm431, %v542, 0.0
        %544 = vadd.xlane.f32.xlu0 %v543
        %v545 = vpop.xlane.xlu0 %544
        %546 = vrot.lane.b32.xlu0 %v429, 88
        %v547 = vpop.permute.xlu0 %546
        %v550 = vsel %vm431, %v542, 0
        %552 = vmatpush.msra.mxu0 0.0
        %553 = vmatpush.msra.mxu0 0.0
        %554 = vmatpush.msra.mxu0 0.0
        %555 = vmatpush.msra.mxu0 0.0
        %556 = vmatpush.msra.mxu0 0.0
        %557 = vmatpush.msra.mxu0 0.0
        %558 = vmatpush.msra.mxu0 0.0
        %559 = vmatpush.msra.mxu0 0.0
        %560 = vmatpush.msra.mxu0 0.0
        %561 = vmatpush.msra.mxu0 0.0
        %562 = vmatpush.msra.mxu0 0.0
        %563 = vmatpush.msra.mxu0 0.0
        %564 = vmatpush.msra.mxu0 0.0
        %565 = vmatpush.msra.mxu0 0.0
        %566 = vmatpush.msra.mxu0 0.0
        %567 = vmatpush.msra.mxu0 %v547
        %568 = vmatmul.f32.gmra.mxu0 %v550
        %v569 = vpop.f32.mrf.mxu0
        %v570 = vadd.f32 0.0, %v569
        %571 = vdwg.mxu0
        %v572 = vrcp.pop %v545
        %v573 = vmul.f32 %v545, %v572
        %v574 = vsub.f32 1.0, %v573
        %v575 = vmul.f32 %v572, %v574
        %v576 = vadd.f32 %v572, %v575
        %vm577 = vweird.f32 %v545
        %vm578 = vweird.f32 %v572
        %vm579 = vmor %vm577, %vm578
        %v580 = vsel %vm579, %v572, %v576
        %v581 = vand.u32 2147483647, %v545
        %vm582 = vcmp.eq.f32.partialorder %v581, 8.507059e+37
        %v583 = vand.u32 %v545, 2147483648
        %v584 = vor.u32 1.1754944e-38, %v583
        %v585 = vsel %vm582, %v584, %v580
        %v586 = vmul.f32 %v570, %v585
        %588 = vrot.lane.b32.xlu0 %v586, 8
        %v589 = vpop.permute.xlu0 %588
        %vm591 = vcmask 130112
        %592 = vst.msk [vmem:[#allocation2] sm:$0xff] %vm591, %v589
        %593 = vrot.lane.b32.xlu0 %v402, 112
        %v594 = vpop.permute.xlu0 %593
        %595 = vrot.lane.b32.xlu0 %v429, 112
        %v596 = vpop.permute.xlu0 %595
        %v597 = vsel %vm431, %v594, 0
        %v599 = vsel %vm431, %v596, 0
        %601 = vmatpush.xpose.msra.mxu0 0.0
        %602 = vmatpush.xpose.msra.mxu0 0.0
        %603 = vmatpush.xpose.msra.mxu0 0.0
        %604 = vmatpush.xpose.msra.mxu0 0.0
        %605 = vmatpush.xpose.msra.mxu0 0.0
        %606 = vmatpush.xpose.msra.mxu0 0.0
        %607 = vmatpush.xpose.msra.mxu0 0.0
        %608 = vmatpush.xpose.msra.mxu0 0.0
        %609 = vmatpush.xpose.msra.mxu0 0.0
        %610 = vmatpush.xpose.msra.mxu0 0.0
        %611 = vmatpush.xpose.msra.mxu0 0.0
        %612 = vmatpush.xpose.msra.mxu0 0.0
        %613 = vmatpush.xpose.msra.mxu0 0.0
        %614 = vmatpush.xpose.msra.mxu0 0.0
        %615 = vmatpush.xpose.msra.mxu0 0.0
        %616 = vmatpush.xpose.msra.mxu0 %v599
        %617 = vmatmul.f32.gmra.mxu0 %v597
        %v618 = vpop.f32.mrf.mxu0
        %v619 = vadd.f32 0.0, %v618
        %620 = vdwg.mxu0
        %v621 = vsel %vm431, %v619, -inf
        %622 = vmax.xlane.f32.xlu0 %v621
        %v623 = vpop.xlane.xlu0 %622
        %v624 = vsub.f32 %v619, %v623
        %v625 = vmul.f32 %v624, 1.442695
        %v626 = vpow.pop %v625
        %v627 = vsel %vm431, %v626, 0.0
        %628 = vadd.xlane.f32.xlu0 %v627
        %v629 = vpop.xlane.xlu0 %628
        %630 = vrot.lane.b32.xlu0 %v429, 80
        %v631 = vpop.permute.xlu0 %630
        %v634 = vsel %vm431, %v626, 0
        %636 = vmatpush.msra.mxu0 0.0
        %637 = vmatpush.msra.mxu0 0.0
        %638 = vmatpush.msra.mxu0 0.0
        %639 = vmatpush.msra.mxu0 0.0
        %640 = vmatpush.msra.mxu0 0.0
        %641 = vmatpush.msra.mxu0 0.0
        %642 = vmatpush.msra.mxu0 0.0
        %643 = vmatpush.msra.mxu0 0.0
        %644 = vmatpush.msra.mxu0 0.0
        %645 = vmatpush.msra.mxu0 0.0
        %646 = vmatpush.msra.mxu0 0.0
        %647 = vmatpush.msra.mxu0 0.0
        %648 = vmatpush.msra.mxu0 0.0
        %649 = vmatpush.msra.mxu0 0.0
        %650 = vmatpush.msra.mxu0 0.0
        %651 = vmatpush.msra.mxu0 %v631
        %652 = vmatmul.f32.gmra.mxu0 %v634
        %v653 = vpop.f32.mrf.mxu0
        %v654 = vadd.f32 0.0, %v653
        %655 = vdwg.mxu0
        %v656 = vrcp.pop %v629
        %v657 = vmul.f32 %v629, %v656
        %v658 = vsub.f32 1.0, %v657
        %v659 = vmul.f32 %v656, %v658
        %v660 = vadd.f32 %v656, %v659
        %vm661 = vweird.f32 %v629
        %vm662 = vweird.f32 %v656
        %vm663 = vmor %vm661, %vm662
        %v664 = vsel %vm663, %v656, %v660
        %v665 = vand.u32 2147483647, %v629
        %vm666 = vcmp.eq.f32.partialorder %v665, 8.507059e+37
        %v667 = vand.u32 %v629, 2147483648
        %v668 = vor.u32 1.1754944e-38, %v667
        %v669 = vsel %vm666, %v668, %v664
        %v670 = vmul.f32 %v654, %v669
        %672 = vrot.lane.b32.xlu0 %v670, 16
        %v673 = vpop.permute.xlu0 %672
        %vm675 = vcmask 195712
        %676 = vst.msk [vmem:[#allocation2] sm:$0xff] %vm675, %v673
        %677 = vrot.lane.b32.xlu0 %v402, 104
        %v678 = vpop.permute.xlu0 %677
        %679 = vrot.lane.b32.xlu0 %v429, 104
        %v680 = vpop.permute.xlu0 %679
        %v681 = vsel %vm431, %v678, 0
        %v683 = vsel %vm431, %v680, 0
        %685 = vmatpush.xpose.msra.mxu0 0.0
        %686 = vmatpush.xpose.msra.mxu0 0.0
        %687 = vmatpush.xpose.msra.mxu0 0.0
        %688 = vmatpush.xpose.msra.mxu0 0.0
        %689 = vmatpush.xpose.msra.mxu0 0.0
        %690 = vmatpush.xpose.msra.mxu0 0.0
        %691 = vmatpush.xpose.msra.mxu0 0.0
        %692 = vmatpush.xpose.msra.mxu0 0.0
        %693 = vmatpush.xpose.msra.mxu0 0.0
        %694 = vmatpush.xpose.msra.mxu0 0.0
        %695 = vmatpush.xpose.msra.mxu0 0.0
        %696 = vmatpush.xpose.msra.mxu0 0.0
        %697 = vmatpush.xpose.msra.mxu0 0.0
        %698 = vmatpush.xpose.msra.mxu0 0.0
        %699 = vmatpush.xpose.msra.mxu0 0.0
        %700 = vmatpush.xpose.msra.mxu0 %v683
        %701 = vmatmul.f32.gmra.mxu0 %v681
        %v702 = vpop.f32.mrf.mxu0
        %v703 = vadd.f32 0.0, %v702
        %704 = vdwg.mxu0
        %v705 = vsel %vm431, %v703, -inf
        %706 = vmax.xlane.f32.xlu0 %v705
        %v707 = vpop.xlane.xlu0 %706
        %v708 = vsub.f32 %v703, %v707
        %v709 = vmul.f32 %v708, 1.442695
        %v710 = vpow.pop %v709
        %v711 = vsel %vm431, %v710, 0.0
        %712 = vadd.xlane.f32.xlu0 %v711
        %v713 = vpop.xlane.xlu0 %712
        %714 = vrot.lane.b32.xlu0 %v429, 72
        %v715 = vpop.permute.xlu0 %714
        %v718 = vsel %vm431, %v710, 0
        %720 = vmatpush.msra.mxu0 0.0
        %721 = vmatpush.msra.mxu0 0.0
        %722 = vmatpush.msra.mxu0 0.0
        %723 = vmatpush.msra.mxu0 0.0
        %724 = vmatpush.msra.mxu0 0.0
        %725 = vmatpush.msra.mxu0 0.0
        %726 = vmatpush.msra.mxu0 0.0
        %727 = vmatpush.msra.mxu0 0.0
        %728 = vmatpush.msra.mxu0 0.0
        %729 = vmatpush.msra.mxu0 0.0
        %730 = vmatpush.msra.mxu0 0.0
        %731 = vmatpush.msra.mxu0 0.0
        %732 = vmatpush.msra.mxu0 0.0
        %733 = vmatpush.msra.mxu0 0.0
        %734 = vmatpush.msra.mxu0 0.0
        %735 = vmatpush.msra.mxu0 %v715
        %736 = vmatmul.f32.gmra.mxu0 %v718
        %v737 = vpop.f32.mrf.mxu0
        %v738 = vadd.f32 0.0, %v737
        %739 = vdwg.mxu0
        %v740 = vrcp.pop %v713
        %v741 = vmul.f32 %v713, %v740
        %v742 = vsub.f32 1.0, %v741
        %v743 = vmul.f32 %v740, %v742
        %v744 = vadd.f32 %v740, %v743
        %vm745 = vweird.f32 %v713
        %vm746 = vweird.f32 %v740
        %vm747 = vmor %vm745, %vm746
        %v748 = vsel %vm747, %v740, %v744
        %v749 = vand.u32 2147483647, %v713
        %vm750 = vcmp.eq.f32.partialorder %v749, 8.507059e+37
        %v751 = vand.u32 %v713, 2147483648
        %v752 = vor.u32 1.1754944e-38, %v751
        %v753 = vsel %vm750, %v752, %v748
        %v754 = vmul.f32 %v738, %v753
        %756 = vrot.lane.b32.xlu0 %v754, 24
        %v757 = vpop.permute.xlu0 %756
        %vm759 = vcmask 261312
        %760 = vst.msk [vmem:[#allocation2] sm:$0xff] %vm759, %v757
        %v761 = vld [vmem:[#allocation2] sm:$0xff]
        %v762 = vld [vmem:[#allocation11] sm:$0xff]
        %v763 = vld [vmem:[#allocation11 + $0x8] sm:$0xff]
        %v764 = vld [vmem:[#allocation11 + $0x10] sm:$0xff]
        %v765 = vld [vmem:[#allocation11 + $0x18] sm:$0xff]
        %v766 = vld [vmem:[%s5] sm:$0x1]
        %v768 = vperm.slane %v766, 0
        %v771 = vsel %vm380, %v761, 0
        %773 = vmatpush.msra.mxu0 0.0
        %774 = vmatpush.msra.mxu0 0.0
        %775 = vmatpush.msra.mxu0 0.0
        %776 = vmatpush.msra.mxu0 0.0
        %777 = vmatpush.msra.mxu0 0.0
        %778 = vmatpush.msra.mxu0 0.0
        %779 = vmatpush.msra.mxu0 0.0
        %780 = vmatpush.msra.mxu0 0.0
        %781 = vmatpush.msra.mxu0 0.0
        %782 = vmatpush.msra.mxu0 0.0
        %783 = vmatpush.msra.mxu0 0.0
        %784 = vmatpush.msra.mxu0 0.0
        %785 = vmatpush.msra.mxu0 %v765
        %786 = vmatpush.msra.mxu0 %v764
        %787 = vmatpush.msra.mxu0 %v763
        %788 = vmatpush.msra.mxu0 %v762
        %789 = vmatmul.f32.gmra.mxu0 %v771
        %v790 = vpop.f32.mrf.mxu0
        %v791 = vadd.f32 %v768, %v790
        %792 = vdwg.mxu0
        %793 = vst.msk [vmem:[%s373] sm:$0xff] %vm380, %v791
        %s794 = sand.u32 %s187, 1
        %s795 = scalar_lea.sflag [#allocation5], %s794
        %s796 = sand.u32 %s187, 1
        %s797 = smul.addr %s796, 8
        %s798 = scalar_lea.vmem [#allocation12], %s797
        // Predicated region
        $region65: #{tpu_custom_call.1} parent=43 // pred_check
          %p799 = pneg %p197
        $region66: #{tpu_custom_call.1} parent=43 // pred_check_branch
          %801 = sbr.rel (%p799) target = $region68
        $region67: #{tpu_custom_call.1} parent=43 // pred_region
          %803 = vsyncadd %s795, 0
          %s804 = sadd.s32 %s32, %s31
          %s805 = smul.addr %s804, 8
          %s806 = scalar_lea.hbm %s6, %s805
          %s808 = sshll.u32 %s798, 4
          %s809 = int_to_ptr.vmem [resolvable:$true] %s808
          %s810 = sshll.u32 %s806, 4
          %s811 = int_to_ptr.hbm [resolvable:$true] %s810
          %813 = dma.vmem_to_hbm [thread:$0]  %s809, 128, %s811, %s795
        $region68: #{tpu_custom_call.1} parent=43 // pred_fallthru
          _
      $region44: #{tpu_custom_call.1} parent=5 // pred_fallthru
        _
      %p814 = scmp.le.s32.totalorder 2, %s22
      // Predicated region
      $region69: #{tpu_custom_call.1} parent=5 // pred_check
        %p815 = pneg %p814
      $region70: #{tpu_custom_call.1} parent=5 // pred_check_branch
        %817 = sbr.rel (%p815) target = $region72
      $region71: #{tpu_custom_call.1} parent=5 // pred_region
        %s818 = ssub.s32 %s22, 2
        // Predicated region
        $region73: #{tpu_custom_call.1} parent=71 // pred_check
          %p819 = pneg %p203
        $region74: #{tpu_custom_call.1} parent=71 // pred_check_branch
          %821 = sbr.rel (%p819) target = $region76
        $region75: #{tpu_custom_call.1} parent=71 // pred_region
          %s822 = sand.u32 %s188, 1
          %s823 = scalar_lea.sflag [#allocation5], %s822
          %s824 = sand.u32 %s188, 1
          %s825 = smul.addr %s824, 8
          %s826 = scalar_lea.vmem [#allocation12], %s825
          %828 = dma.done %s823, 128
        $region76: #{tpu_custom_call.1} parent=71 // pred_fallthru
          _
      $region72: #{tpu_custom_call.1} parent=5 // pred_fallthru
        _
    $region6: #{tpu_custom_call.1} parent=1 // loop_footer
      %s26 = sadd.s32 1, %s22
    $region7: #{tpu_custom_call.1} parent=1 // loop_footer_branch
      %21 = sbr.rel target = $region3
    $region8: #{tpu_custom_call.1} parent=1 // loop_exit
      _
    %829 = vsyncpa [#allocation4], 1
    %s830 = scalar_lea.sflag [#allocation4], 1
    %831 = vsyncpa %s830, 1
    %832 = vsyncpa [#allocation7], 1
    %s833 = scalar_lea.sflag [#allocation7], 1
    %834 = vsyncpa %s833, 1
    %835 = vsyncpa [#allocation10], 1
    %836 = vsyncpa [#allocation5], 1
    %s837 = scalar_lea.sflag [#allocation5], 1
    %838 = vsyncpa %s837, 1

</llo_original>
